<compile_context>
chip_gen: v6e
topology: v6e:2x2x1
jax: 0.10.0
libtpu: 0.0.40
codegen_flags: <defaults>
</compile_context>

<pallas_src>
import functools

import jax
import jax.numpy as jnp
from jax.experimental import pallas as pl
from jax.experimental.pallas import tpu as pltpu


def _round_up(n: int, m: int) -> int:
    return ((n + m - 1) // m) * m


def _sad_cos_kernel(inp_ref, tgt_ref, cos_ref):
    """cos = <x,t> / (||x|| * ||t||), per row.

    inp_ref, tgt_ref : (tile_b, num_bands) VMEM tiles (any float dtype)
    cos_ref          : (tile_b, 1) f32 VMEM tile
    """
    x = inp_ref[...].astype(jnp.float32)
    t = tgt_ref[...].astype(jnp.float32)

    # torch.bmm(v.view(-1,1,N), w.view(-1,N,1)) == row-wise sum(v*w).
    sum_xt = jnp.sum(x * t, axis=-1, keepdims=True)
    sum_xx = jnp.sum(x * x, axis=-1, keepdims=True)
    sum_tt = jnp.sum(t * t, axis=-1, keepdims=True)

    # Single rsqrt on the EUP instead of two sqrts + mul + div on the VALU.
    # NOTE: no clipping, exactly like the PyTorch reference (acos(>1) -> NaN,
    # zero-norm rows -> inf/NaN), to keep forward semantics identical.
    cos_ref[...] = sum_xt * jax.lax.rsqrt(sum_xx * sum_tt)


@functools.partial(jax.jit, static_argnames=("num_bands", "tile_b"))
def sad(inputs, target, num_bands: int = 156, tile_b: int = 2048):
    """JAX/Pallas equivalent of SAD.forward.

    inputs, target: arrays reshapeable to (-1, num_bands), any float dtype.
    Returns the spectral angle with shape (batch, 1, 1) in float32
    (matching the rank of the torch.bmm output).
    """
    x = jnp.reshape(inputs, (-1, num_bands))
    t = jnp.reshape(target, (-1, num_bands))
    b = x.shape[0]

    # Effective row tile: multiple of 8 (sublanes), capped at tile_b and never
    # larger than the (rounded-up) batch.
    tb = min(_round_up(tile_b, 8), _round_up(max(b, 1), 8))
    b_pad = _round_up(max(b, 1), tb)
    if b_pad != b:
        # Pad with ones so padded rows give cos = 1 (harmless; sliced off below).
        pad = b_pad - b
        x = jnp.pad(x, ((0, pad), (0, 0)), constant_values=1)
        t = jnp.pad(t, ((0, pad), (0, 0)), constant_values=1)

    cos = pl.pallas_call(
        _sad_cos_kernel,
        out_shape=jax.ShapeDtypeStruct((b_pad, 1), jnp.float32),
        grid=(b_pad // tb,),
        in_specs=[
            pl.BlockSpec((tb, num_bands), lambda i: (i, 0)),
            pl.BlockSpec((tb, num_bands), lambda i: (i, 0)),
        ],
        out_specs=pl.BlockSpec((tb, 1), lambda i: (i, 0)),
        compiler_params=pltpu.CompilerParams(
            # Single grid axis is embarrassingly parallel -> shards across the
            # two TensorCores on v7x; on v5e/v6e it is a sequential loop whose
            # per-step overhead is amortized by the large row tiles.
            dimension_semantics=("parallel",),
        ),
    )(x, t)

    # TODO(synk): arccos stays in the jitted wrapper (no guaranteed Mosaic acos
    # lowering); XLA fuses it with the slice/reshape so there is no extra HBM
    # round trip beyond the tiny (b, 1) cos array.
    angle = jnp.arccos(cos[:b])
    return angle.reshape(b, 1, 1)


def _sad_ref(inputs, target, num_bands: int = 156):
    """Pure-JAX reference mirroring the torch implementation."""
    x = jnp.reshape(inputs, (-1, num_bands)).astype(jnp.float32)
    t = jnp.reshape(target, (-1, num_bands)).astype(jnp.float32)
    input_norm = jnp.sqrt(jnp.sum(x * x, axis=-1, keepdims=True))
    target_norm = jnp.sqrt(jnp.sum(t * t, axis=-1, keepdims=True))
    summation = jnp.sum(x * t, axis=-1, keepdims=True)
    return jnp.arccos(summation / (input_norm * target_norm))[:, :, None]


if __name__ == "__main__":
    NUM_BANDS = 156   # module default
    BATCH = 8

    key = jax.random.PRNGKey(0)
    k_in, k_tg, k_in2, k_tg2 = jax.random.split(key, 4)
    # Hyperspectral-like non-negative reflectances (keeps cos safely in (0, 1]).
    inputs = jax.random.uniform(k_in, (BATCH, NUM_BANDS), jnp.float32) + 0.1
    target = jax.random.uniform(k_tg, (BATCH, NUM_BANDS), jnp.float32) + 0.1

    angle = jax.block_until_ready(sad(inputs, target, num_bands=NUM_BANDS))
    ref = _sad_ref(inputs, target, num_bands=NUM_BANDS)
    assert angle.shape == (BATCH, 1, 1), angle.shape
    assert jnp.allclose(angle, ref, atol=1e-4, rtol=1e-4), (angle, ref)

    # Non-multiple batch exercises the padding / tail path.
    B2 = 13
    inputs2 = jax.random.uniform(k_in2, (B2, NUM_BANDS), jnp.float32) + 0.1
    target2 = jax.random.uniform(k_tg2, (B2, NUM_BANDS), jnp.float32) + 0.1
    angle2 = jax.block_until_ready(sad(inputs2, target2, num_bands=NUM_BANDS))
    ref2 = _sad_ref(inputs2, target2, num_bands=NUM_BANDS)
    assert angle2.shape == (B2, 1, 1), angle2.shape
    assert jnp.allclose(angle2, ref2, atol=1e-4, rtol=1e-4), (angle2, ref2)

    print("KERNEL_OK")
</pallas_src>

<mosaic_0001>
module attributes {stable_mosaic.version = 11 : i64} {
  func.func @_sad_cos_kernel(%arg0: i32, %arg1: memref<8x156xf32, #tpu.memory_space<vmem>>, %arg2: memref<8x156xf32, #tpu.memory_space<vmem>>, %arg3: memref<8x1xf32, #tpu.memory_space<vmem>>) attributes {dimension_semantics = [#tpu.dimension_semantics<parallel>], iteration_bounds = array<i64: 1>, scalar_prefetch = 0 : i64, scratch_operands = 0 : i64, tpu.core_type = #tpu.core_type<tc>, window_params = [{transform_indices = @transform_0, window_bounds = array<i64: 8, 156>}, {transform_indices = @transform_1, window_bounds = array<i64: 8, 156>}, {transform_indices = @transform_2, window_bounds = array<i64: 8, 1>}]} {
    %c0 = arith.constant 0 : index
    %c0_0 = arith.constant 0 : index
    %0 = vector.load %arg1[%c0, %c0_0] : memref<8x156xf32, #tpu.memory_space<vmem>>, vector<8x156xf32>
    %c0_1 = arith.constant 0 : index
    %c0_2 = arith.constant 0 : index
    %1 = vector.load %arg2[%c0_1, %c0_2] : memref<8x156xf32, #tpu.memory_space<vmem>>, vector<8x156xf32>
    %2 = arith.mulf %0, %1 : vector<8x156xf32>
    %cst = arith.constant dense<0.000000e+00> : vector<8xf32>
    %3 = vector.multi_reduction <add>, %2, %cst [1] : vector<8x156xf32> to vector<8xf32>
    %4 = vector.shape_cast %3 : vector<8xf32> to vector<8x1xf32>
    %5 = arith.mulf %0, %0 : vector<8x156xf32>
    %cst_3 = arith.constant dense<0.000000e+00> : vector<8xf32>
    %6 = vector.multi_reduction <add>, %5, %cst_3 [1] : vector<8x156xf32> to vector<8xf32>
    %7 = vector.shape_cast %6 : vector<8xf32> to vector<8x1xf32>
    %8 = arith.mulf %1, %1 : vector<8x156xf32>
    %cst_4 = arith.constant dense<0.000000e+00> : vector<8xf32>
    %9 = vector.multi_reduction <add>, %8, %cst_4 [1] : vector<8x156xf32> to vector<8xf32>
    %10 = vector.shape_cast %9 : vector<8xf32> to vector<8x1xf32>
    %11 = arith.mulf %7, %10 : vector<8x1xf32>
    %12 = math.rsqrt %11 : vector<8x1xf32>
    %13 = arith.mulf %4, %12 : vector<8x1xf32>
    %c0_5 = arith.constant 0 : index
    %c0_6 = arith.constant 0 : index
    %14 = vector.load %arg3[%c0_5, %c0_6] : memref<8x1xf32, #tpu.memory_space<vmem>>, vector<8x1xf32>
    tpu.vector_store %arg3[%c0_5, %c0_6], %13 {strides = array<i32>} : memref<8x1xf32, #tpu.memory_space<vmem>>, vector<8x1xf32>,
    return
  }
  func.func @transform_0(%arg0: i32) -> (i32, i32) {
    %c0_i32 = arith.constant 0 : i32
    %c0_i32_0 = arith.constant 0 : i32
    return %arg0, %c0_i32 : i32, i32
  }
  func.func @transform_1(%arg0: i32) -> (i32, i32) {
    %c0_i32 = arith.constant 0 : i32
    %c0_i32_0 = arith.constant 0 : i32
    return %arg0, %c0_i32 : i32, i32
  }
  func.func @transform_2(%arg0: i32) -> (i32, i32) {
    %c0_i32 = arith.constant 0 : i32
    %c0_i32_0 = arith.constant 0 : i32
    return %arg0, %c0_i32 : i32, i32
  }
}

</mosaic_0001>

<llo_original>
// kernel: sad.1
$region0: #{sad.1}
  #allocation0 [shape = 'u32[]', space=smem, size = 0x4, offset = 0x4, fixed_abs, tag = 'smem constant byte address 0x4 - core index']
  #allocation1 [shape = 'u32[144,128]{1,0:T(1,128)}', space=vmem, size = 0x12000, scoped, tag = 'internal scratch']
  %s0 = inlined_call_operand.hbm [shape: f32[8,156], index: 0, kind: input, shape index: {}]
  %s1 = inlined_call_operand.hbm [shape: f32[8,156], index: 1, kind: input, shape index: {}]
  %s2 = inlined_call_operand.vmem [shape: f32[8,1], index: 2, kind: output, shape index: {}]
  %s3 = sld [smem:[#allocation0]]
  $region26: #{sad.1} parent=0
    _
  %s5 = ssub.s32 1, %s3
  %s6 = scalar_select 0, %s5, %s3
  $region1: #{sad.1} parent=0
    #allocation2 [shape = 'u8[8192]{0}', space=vmem, size = 0x2000, scoped, tag = 'input window, operand 0, single buffered']
    #allocation3 [shape = 's32[1]{0}', space=sflag, size = 0x4, scoped, tag = 'scoped memory for sad.1']
    #allocation4 [shape = 'u8[8192]{0}', space=vmem, size = 0x2000, scoped, tag = 'input window, operand 1, single buffered']
    #allocation5 [shape = 's32[1]{0}', space=sflag, size = 0x4, scoped, tag = 'scoped memory for sad.1']
    %7 = vsyncpa [#allocation3], 0
    %8 = vsyncpa [#allocation5], 0
    // Predicated region
    $region2: #{sad.1} parent=1 // pred_check
      _
    $region3: #{sad.1} parent=1 // pred_check_branch
      %10 = sbr.rel (0) target = $region5
    $region4: #{sad.1} parent=1 // pred_region
      %s12 = ssub.s32 256, 256
      %13 = vsyncadd [#allocation3], %s12
      %s15 = sshll.u32 [#allocation2], 4
      %s16 = int_to_ptr.vmem [resolvable:$true] %s15
      %18 = dma.hbm_to_vmem [thread:$0]  %s0, 256, %s16, [#allocation3]
    $region5: #{sad.1} parent=1 // pred_fallthru
      _
    // Predicated region
    $region6: #{sad.1} parent=1 // pred_check
      _
    $region7: #{sad.1} parent=1 // pred_check_branch
      %20 = sbr.rel (0) target = $region9
    $region8: #{sad.1} parent=1 // pred_region
      %s22 = ssub.s32 256, 256
      %23 = vsyncadd [#allocation5], %s22
      %s25 = sshll.u32 [#allocation4], 4
      %s26 = int_to_ptr.vmem [resolvable:$true] %s25
      %28 = dma.hbm_to_vmem [thread:$0]  %s1, 256, %s26, [#allocation5]
    $region9: #{sad.1} parent=1 // pred_fallthru
      _
    // Predicated region
    $region10: #{sad.1} parent=1 // pred_check
      _
    $region11: #{sad.1} parent=1 // pred_check_branch
      %30 = sbr.rel (0) target = $region13
    $region12: #{sad.1} parent=1 // pred_region
      %31 = dma.done [#allocation3], 256
    $region13: #{sad.1} parent=1 // pred_fallthru
      _
    // Predicated region
    $region14: #{sad.1} parent=1 // pred_check
      _
    $region15: #{sad.1} parent=1 // pred_check_branch
      %33 = sbr.rel (0) target = $region17
    $region16: #{sad.1} parent=1 // pred_region
      %34 = dma.done [#allocation5], 256
    $region17: #{sad.1} parent=1 // pred_fallthru
      _
    %v35 = vld [vmem:[#allocation2] sm:$0xff]
    %v36 = vld [vmem:[#allocation2 + $0x8] sm:$0xff]
    %v37 = vld [vmem:[#allocation4] sm:$0xff]
    %v38 = vld [vmem:[#allocation4 + $0x8] sm:$0xff]
    %v39 = vmul.f32 %v35, %v37
    %v40 = vmul.f32 %v36, %v38
    %vm41 = vcmask 228352
    %v42 = vsel %vm41, %v40, 0.0
    %v43 = vadd.f32 %v39, %v42
    %44 = vadd.xlane.f32.xlu0 %v43
    %v45 = vpop.xlane.xlu0 %44
    %v46 = vmul.f32 %v35, %v35
    %v47 = vmul.f32 %v36, %v36
    %v48 = vsel %vm41, %v47, 0.0
    %v49 = vadd.f32 %v46, %v48
    %50 = vadd.xlane.f32.xlu0 %v49
    %v51 = vpop.xlane.xlu0 %50
    %v52 = vmul.f32 %v37, %v37
    %v53 = vmul.f32 %v38, %v38
    %v54 = vsel %vm41, %v53, 0.0
    %v55 = vadd.f32 %v52, %v54
    %56 = vadd.xlane.f32.xlu0 %v55
    %v57 = vpop.xlane.xlu0 %56
    %v58 = vmul.f32 %v51, %v57
    %v59 = vrsqrt.pop %v58
    %v60 = vmul.f32 %v45, %v59
    %vm61 = vcmask 7168
    %62 = vst.msk [vmem:[%s2] sm:$0xff] %vm61, %v60
    // Predicated region
    $region18: #{sad.1} parent=1 // pred_check
      _
    $region19: #{sad.1} parent=1 // pred_check_branch
      %64 = sbr.rel (0) target = $region21
    $region20: #{sad.1} parent=1 // pred_region
      _
    $region21: #{sad.1} parent=1 // pred_fallthru
      _
    // Predicated region
    $region22: #{sad.1} parent=1 // pred_check
      _
    $region23: #{sad.1} parent=1 // pred_check_branch
      %66 = sbr.rel (0) target = $region25
    $region24: #{sad.1} parent=1 // pred_region
      _
    $region25: #{sad.1} parent=1 // pred_fallthru
      _
    %67 = vsyncpa [#allocation3], 1
    %68 = vsyncpa [#allocation5], 1

</llo_original>
